<compile_context>
chip_gen: v6e
topology: v6e:2x2x1
jax: 0.10.0
libtpu: 0.0.40
codegen_flags: <defaults>
</compile_context>

<pallas_src>
import functools

import jax
import jax.numpy as jnp
from jax.experimental import pallas as pl
from jax.experimental.pallas import tpu as pltpu


def _round_up(n, m):
    return ((n + m - 1) // m) * m


def ffn_kernel(x_ref, w1_ref, b1_ref, w2_ref, b2_ref, o_ref):
    k = pl.program_id(1)  # hidden-dim chunk index

    # Cast x on-chip (saves a separate HBM pad/cast pass in the wrapper).
    x_bf16 = x_ref[...].astype(jnp.bfloat16)

    # First linear chunk (bf16 x bf16 -> f32 on the MXU) + bias + ReLU (f32, VPU).
    h = jnp.dot(x_bf16, w1_ref[...], preferred_element_type=jnp.float32)
    h = jnp.maximum(h + b1_ref[...], 0.0)

    # Second linear chunk: bf16 operands, f32 accumulation.
    partial = jnp.dot(h.astype(jnp.bfloat16), w2_ref[...],
                      preferred_element_type=jnp.float32)

    # Output block is resident across the k axis -> accumulate into it.
    @pl.when(k == 0)
    def _():
        o_ref[...] = partial + b2_ref[...]

    @pl.when(k > 0)
    def _():
        o_ref[...] += partial


@functools.partial(jax.jit, static_argnames=("tm", "th_budget_bytes"))
def ffn_forward(x, w1, b1, w2, b2, *, tm=1024, th_budget_bytes=8 << 20):
    """Fused FFN forward: relu(x @ W1 + b1) @ W2 + b2   (dropout = identity / eval mode).

    x: (B, T, D) float32. w1: (D, H), b1: (1, H), w2: (H, D), b2: (1, D).
    Matmuls run in bf16 with f32 accumulation; bias/ReLU/output stay f32.
    NOTE: nn.Dropout(0.2) is intentionally evaluated in inference mode.
    """
    B, T, D = x.shape
    H = w1.shape[1]
    M = B * T

    # Row tile: large (per-grid-step overhead ~0.35us dominates small tiles for this
    # mem-bound kernel), capped so it never exceeds the row count and so the row grid
    # keeps >= 2 steps when possible (v7x megacore sharding of the "parallel" axis).
    tm_cap = _round_up(M, 8)                 # don't over-pad tiny inputs
    tm_half = _round_up(-(-M // 2), 16)      # aim for at least 2 row steps
    tm_eff = max(8, min(tm, tm_half, tm_cap))
    grid_m = pl.cdiv(M, tm_eff)              # non-divisible: last block masked

    # Hidden dim: lane-dense multiple of 128; tile it when W1/W2 chunks would not fit
    # comfortably in VMEM (resident bf16 W1+W2 blow v7x's 64 MiB VMEM around D ~ 2k).
    Hp = _round_up(H, 128)
    th_max = max(128, (th_budget_bytes // (8 * D)) // 128 * 128)
    th = min(Hp, th_max)
    num_h = pl.cdiv(Hp, th)
    Hp = th * num_h                          # equal-sized hidden chunks

    # Zero-padding of the hidden dim is exact: padded W1 columns + zero b1 entries
    # give h == 0 there, and padded W2 rows are zero, so they contribute nothing.
    x2d = x.reshape(M, D)                    # free reshape; kernel casts to bf16 on-chip
    w1p = jnp.pad(w1, ((0, 0), (0, Hp - H))).astype(jnp.bfloat16)
    w2p = jnp.pad(w2, ((0, Hp - H), (0, 0))).astype(jnp.bfloat16)
    b1p = jnp.pad(b1, ((0, 0), (0, Hp - H))).astype(jnp.float32)
    b2p = b2.astype(jnp.float32)

    # Weights single-buffered when they are grid-invariant; double-buffered when the
    # hidden dim is chunked (their block index then changes with k).
    w_mode = pl.Buffered(1) if num_h == 1 else pl.Buffered(2)
    const_mode = pl.Buffered(1)
    # NOTE: if DMA is exposed after these changes, sweep pl.Buffered(3) on x / out.

    out2d = pl.pallas_call(
        ffn_kernel,
        out_shape=jax.ShapeDtypeStruct((M, D), jnp.float32),
        grid_spec=pltpu.PrefetchScalarGridSpec(
            num_scalar_prefetch=0,
            grid=(grid_m, num_h),
            in_specs=[
                pl.BlockSpec((tm_eff, D), lambda i, k: (i, 0)),                       # x rows (f32)
                pl.BlockSpec((D, th), lambda i, k: (0, k), pipeline_mode=w_mode),     # W1 chunk
                pl.BlockSpec((1, th), lambda i, k: (0, k), pipeline_mode=w_mode),     # b1 chunk
                pl.BlockSpec((th, D), lambda i, k: (k, 0), pipeline_mode=w_mode),     # W2 chunk
                pl.BlockSpec((1, D), lambda i, k: (0, 0), pipeline_mode=const_mode),  # b2
            ],
            out_specs=pl.BlockSpec((tm_eff, D), lambda i, k: (i, 0)),
        ),
        compiler_params=pltpu.CompilerParams(
            dimension_semantics=("parallel", "arbitrary")),
    )(x2d, w1p, b1p, w2p, b2p)

    return out2d.reshape(B, T, D)


def init_ffn_params(key, n_embd, dtype=jnp.float32):
    """Deterministic init mirroring nn.Linear default (uniform +/- 1/sqrt(fan_in))."""
    hidden = 4 * n_embd
    k1, k2, k3, k4 = jax.random.split(key, 4)
    bound1 = 1.0 / jnp.sqrt(n_embd)
    bound2 = 1.0 / jnp.sqrt(hidden)
    # Stored as (in, out) so the kernel computes x @ W + b (PyTorch keeps (out, in)).
    w1 = jax.random.uniform(k1, (n_embd, hidden), dtype, -bound1, bound1)
    b1 = jax.random.uniform(k2, (1, hidden), dtype, -bound1, bound1)
    w2 = jax.random.uniform(k3, (hidden, n_embd), dtype, -bound2, bound2)
    b2 = jax.random.uniform(k4, (1, n_embd), dtype, -bound2, bound2)
    return w1, b1, w2, b2


def _ref_bf16(x, w1, b1, w2, b2):
    """Plain-JAX reference with the same bf16-rounded operands / f32 accumulation."""
    B, T, D = x.shape
    xb = x.reshape(-1, D).astype(jnp.bfloat16).astype(jnp.float32)
    w1b = w1.astype(jnp.bfloat16).astype(jnp.float32)
    w2b = w2.astype(jnp.bfloat16).astype(jnp.float32)
    h = jnp.maximum(xb @ w1b + b1, 0.0)
    y = h.astype(jnp.bfloat16).astype(jnp.float32) @ w2b + b2
    return y.reshape(B, T, D)


if __name__ == "__main__":
    # Small shapes consistent with the transformer FFN: (batch, seq, n_embd=100).
    B, T, n_embd = 2, 8, 100
    key = jax.random.PRNGKey(0)
    kx, kp = jax.random.split(key)

    x = jax.random.normal(kx, (B, T, n_embd), dtype=jnp.float32)
    w1, b1, w2, b2 = init_ffn_params(kp, n_embd)

    out = jax.block_until_ready(ffn_forward(x, w1, b1, w2, b2))
    assert out.shape == (B, T, n_embd)

    # Tight check vs bf16-rounded reference (dropout is identity in eval mode).
    ref = _ref_bf16(x, w1, b1, w2, b2)
    assert jnp.allclose(out, ref, atol=1e-3, rtol=1e-3)

    # Sanity vs full-f32 math (bf16 quantization error only).
    ref_f32 = (jnp.maximum(x.reshape(-1, n_embd) @ w1 + b1, 0.0) @ w2 + b2).reshape(B, T, n_embd)
    assert jnp.allclose(out, ref_f32, atol=5e-2, rtol=5e-2)

    # Boundary check: M not a multiple of the row tile (partial last block; OOB input
    # rows only feed OOB output rows, which are masked on store).
    x2 = jax.random.normal(jax.random.PRNGKey(1), (2, 5, n_embd), dtype=jnp.float32)
    out2 = jax.block_until_ready(ffn_forward(x2, w1, b1, w2, b2, tm=8))
    assert out2.shape == (2, 5, n_embd)
    assert jnp.allclose(out2, _ref_bf16(x2, w1, b1, w2, b2), atol=1e-3, rtol=1e-3)

    print("KERNEL_OK")
</pallas_src>

<mosaic_0001>
module attributes {stable_mosaic.version = 11 : i64} {
  func.func @ffn_kernel(%arg0: i32, %arg1: i32, %arg2: memref<16x100xf32, #tpu.memory_space<vmem>>, %arg3: memref<100x512xbf16, #tpu.memory_space<vmem>>, %arg4: memref<1x512xf32, #tpu.memory_space<vmem>>, %arg5: memref<512x100xbf16, #tpu.memory_space<vmem>>, %arg6: memref<1x100xf32, #tpu.memory_space<vmem>>, %arg7: memref<16x100xf32, #tpu.memory_space<vmem>>) attributes {dimension_semantics = [#tpu.dimension_semantics<parallel>, #tpu.dimension_semantics<arbitrary>], iteration_bounds = array<i64: 1, 1>, scalar_prefetch = 0 : i64, scratch_operands = 0 : i64, tpu.core_type = #tpu.core_type<tc>, window_params = [{transform_indices = @transform_0, window_bounds = array<i64: 16, 100>}, {pipeline_mode = #tpu.pipeline_mode<synchronous>, transform_indices = @transform_1, window_bounds = array<i64: 100, 512>}, {pipeline_mode = #tpu.pipeline_mode<synchronous>, transform_indices = @transform_2, window_bounds = array<i64: 1, 512>}, {pipeline_mode = #tpu.pipeline_mode<synchronous>, transform_indices = @transform_3, window_bounds = array<i64: 512, 100>}, {pipeline_mode = #tpu.pipeline_mode<synchronous>, transform_indices = @transform_4, window_bounds = array<i64: 1, 100>}, {transform_indices = @transform_5, window_bounds = array<i64: 16, 100>}]} {
    %c0 = arith.constant 0 : index
    %c0_0 = arith.constant 0 : index
    %0 = vector.load %arg2[%c0, %c0_0] : memref<16x100xf32, #tpu.memory_space<vmem>>, vector<16x100xf32>
    %1 = arith.truncf %0 : vector<16x100xf32> to vector<16x100xbf16>
    %c0_1 = arith.constant 0 : index
    %c0_2 = arith.constant 0 : index
    %2 = vector.load %arg3[%c0_1, %c0_2] : memref<100x512xbf16, #tpu.memory_space<vmem>>, vector<100x512xbf16>
    %cst = arith.constant dense<0.000000e+00> : vector<16x512xf32>
    %3 = tpu.matmul %1, %2, %cst {dimension_numbers = #tpu.dot_dimension_numbers<[1], [0], [0], [1], [0, 0, 1, 1], [], []>} : vector<16x100xbf16>, vector<100x512xbf16>, vector<16x512xf32> -> vector<16x512xf32>
    %c0_3 = arith.constant 0 : index
    %c0_4 = arith.constant 0 : index
    %4 = vector.load %arg4[%c0_3, %c0_4] : memref<1x512xf32, #tpu.memory_space<vmem>>, vector<1x512xf32>
    %5 = vector.broadcast %4 : vector<1x512xf32> to vector<16x512xf32>
    %6 = arith.addf %3, %5 : vector<16x512xf32>
    %cst_5 = arith.constant 0.000000e+00 : f32
    %7 = vector.broadcast %cst_5 : f32 to vector<16x512xf32>
    %8 = arith.maximumf %6, %7 : vector<16x512xf32>
    %9 = arith.truncf %8 : vector<16x512xf32> to vector<16x512xbf16>
    %c0_6 = arith.constant 0 : index
    %c0_7 = arith.constant 0 : index
    %10 = vector.load %arg5[%c0_6, %c0_7] : memref<512x100xbf16, #tpu.memory_space<vmem>>, vector<512x100xbf16>
    %cst_8 = arith.constant dense<0.000000e+00> : vector<16x100xf32>
    %11 = tpu.matmul %9, %10, %cst_8 {dimension_numbers = #tpu.dot_dimension_numbers<[1], [0], [0], [1], [0, 0, 1, 1], [], []>} : vector<16x512xbf16>, vector<512x100xbf16>, vector<16x100xf32> -> vector<16x100xf32>
    %c0_i32 = arith.constant 0 : i32
    %12 = arith.cmpi eq, %arg1, %c0_i32 : i32
    %13 = arith.extui %12 : i1 to i32
    %c0_i32_9 = arith.constant 0 : i32
    %14 = arith.cmpi ne, %13, %c0_i32_9 : i32
    scf.if %14 {
      %c0_12 = arith.constant 0 : index
      %c0_13 = arith.constant 0 : index
      %18 = vector.load %arg6[%c0_12, %c0_13] : memref<1x100xf32, #tpu.memory_space<vmem>>, vector<1x100xf32>
      %19 = vector.broadcast %18 : vector<1x100xf32> to vector<16x100xf32>
      %20 = arith.addf %11, %19 : vector<16x100xf32>
      %c0_14 = arith.constant 0 : index
      %c0_15 = arith.constant 0 : index
      %21 = vector.load %arg7[%c0_14, %c0_15] : memref<16x100xf32, #tpu.memory_space<vmem>>, vector<16x100xf32>
      tpu.vector_store %arg7[%c0_14, %c0_15], %20 {strides = array<i32>} : memref<16x100xf32, #tpu.memory_space<vmem>>, vector<16x100xf32>,
    } else {
    }
    %c0_i32_10 = arith.constant 0 : i32
    %15 = arith.cmpi sgt, %arg1, %c0_i32_10 : i32
    %16 = arith.extui %15 : i1 to i32
    %c0_i32_11 = arith.constant 0 : i32
    %17 = arith.cmpi ne, %16, %c0_i32_11 : i32
    scf.if %17 {
      %c0_12 = arith.constant 0 : index
      %c0_13 = arith.constant 0 : index
      %18 = vector.load %arg7[%c0_12, %c0_13] : memref<16x100xf32, #tpu.memory_space<vmem>>, vector<16x100xf32>
      %19 = arith.addf %18, %11 : vector<16x100xf32>
      %c0_14 = arith.constant 0 : index
      %c0_15 = arith.constant 0 : index
      %20 = vector.load %arg7[%c0_14, %c0_15] : memref<16x100xf32, #tpu.memory_space<vmem>>, vector<16x100xf32>
      tpu.vector_store %arg7[%c0_14, %c0_15], %19 {strides = array<i32>} : memref<16x100xf32, #tpu.memory_space<vmem>>, vector<16x100xf32>,
    } else {
    }
    return
  }
  func.func @transform_0(%arg0: i32, %arg1: i32) -> (i32, i32) {
    %c0_i32 = arith.constant 0 : i32
    %c0_i32_0 = arith.constant 0 : i32
    return %arg0, %c0_i32 : i32, i32
  }
  func.func @transform_1(%arg0: i32, %arg1: i32) -> (i32, i32) {
    %c0_i32 = arith.constant 0 : i32
    %c0_i32_0 = arith.constant 0 : i32
    return %c0_i32, %arg1 : i32, i32
  }
  func.func @transform_2(%arg0: i32, %arg1: i32) -> (i32, i32) {
    %c0_i32 = arith.constant 0 : i32
    %c0_i32_0 = arith.constant 0 : i32
    return %c0_i32, %arg1 : i32, i32
  }
  func.func @transform_3(%arg0: i32, %arg1: i32) -> (i32, i32) {
    %c0_i32 = arith.constant 0 : i32
    %c0_i32_0 = arith.constant 0 : i32
    return %arg1, %c0_i32 : i32, i32
  }
  func.func @transform_4(%arg0: i32, %arg1: i32) -> (i32, i32) {
    %c0_i32 = arith.constant 0 : i32
    %c0_i32_0 = arith.constant 0 : i32
    %c0_i32_1 = arith.constant 0 : i32
    return %c0_i32, %c0_i32_0 : i32, i32
  }
  func.func @transform_5(%arg0: i32, %arg1: i32) -> (i32, i32) {
    %c0_i32 = arith.constant 0 : i32
    %c0_i32_0 = arith.constant 0 : i32
    return %arg0, %c0_i32 : i32, i32
  }
}

</mosaic_0001>

<llo_original>
// kernel: ffn_forward.1
$region0: #{ffn_forward.1}
  #allocation0 [shape = 'u32[]', space=smem, size = 0x4, offset = 0x4, fixed_abs, tag = 'smem constant byte address 0x4 - core index']
  #allocation1 [shape = 'u32[144,128]{1,0:T(1,128)}', space=vmem, size = 0x12000, scoped, tag = 'internal scratch']
  %s0 = inlined_call_operand.vmem [shape: f32[16,100], index: 0, kind: input, shape index: {}]
  %s1 = inlined_call_operand.vmem [shape: bf16[100,512], index: 1, kind: input, shape index: {}]
  %s2 = inlined_call_operand.vmem [shape: f32[1,512], index: 2, kind: input, shape index: {}]
  %s3 = inlined_call_operand.vmem [shape: bf16[512,100], index: 3, kind: input, shape index: {}]
  %s4 = inlined_call_operand.vmem [shape: f32[1,100], index: 4, kind: input, shape index: {}]
  %s5 = inlined_call_operand.hbm [shape: f32[16,100], index: 5, kind: output, shape index: {}]
  %s6 = sld [smem:[#allocation0]]
  $region38: #{ffn_forward.1} parent=0
    _
  %s8 = ssub.s32 1, %s6
  %s9 = scalar_select 0, %s8, %s6
  $region1: #{ffn_forward.1} parent=0
    #allocation2 [shape = 'u8[8192]{0}', space=vmem, size = 0x2000, scoped, tag = 'output window, operand 0, single buffered']
    #allocation3 [shape = 's32[1]{0}', space=sflag, size = 0x4, scoped, tag = 'scoped memory for ffn_forward.1']
    %10 = vsyncpa [#allocation3], 0
    // Predicated region
    $region2: #{ffn_forward.1} parent=1 // pred_check
      _
    $region3: #{ffn_forward.1} parent=1 // pred_check_branch
      %12 = sbr.rel (0) target = $region5
    $region4: #{ffn_forward.1} parent=1 // pred_region
      _
    $region5: #{ffn_forward.1} parent=1 // pred_fallthru
      _
    // Predicated region
    $region6: #{ffn_forward.1} parent=1 // pred_check
      _
    $region7: #{ffn_forward.1} parent=1 // pred_check_branch
      %14 = sbr.rel (0) target = $region9
    $region8: #{ffn_forward.1} parent=1 // pred_region
      _
    $region9: #{ffn_forward.1} parent=1 // pred_fallthru
      _
    // Predicated region
    $region10: #{ffn_forward.1} parent=1 // pred_check
      _
    $region11: #{ffn_forward.1} parent=1 // pred_check_branch
      %16 = sbr.rel (0) target = $region13
    $region12: #{ffn_forward.1} parent=1 // pred_region
      _
    $region13: #{ffn_forward.1} parent=1 // pred_fallthru
      _
    // Predicated region
    $region14: #{ffn_forward.1} parent=1 // pred_check
      _
    $region15: #{ffn_forward.1} parent=1 // pred_check_branch
      %18 = sbr.rel (0) target = $region17
    $region16: #{ffn_forward.1} parent=1 // pred_region
      _
    $region17: #{ffn_forward.1} parent=1 // pred_fallthru
      _
    // Predicated region
    $region18: #{ffn_forward.1} parent=1 // pred_check
      _
    $region19: #{ffn_forward.1} parent=1 // pred_check_branch
      %20 = sbr.rel (0) target = $region21
    $region20: #{ffn_forward.1} parent=1 // pred_region
      _
    $region21: #{ffn_forward.1} parent=1 // pred_fallthru
      _
    %v22 = vld [vmem:[%s0] sm:$0xff]
    %v23 = vld [vmem:[%s0 + $0x8] sm:$0xff]
    %v24 = vpack.c.bf16 %v23, %v22
    %v25 = vld [vmem:[%s1] sm:$0xff]
    %v26 = vld [vmem:[%s1 + $0x8] sm:$0xff]
    %v27 = vld [vmem:[%s1 + $0x10] sm:$0xff]
    %v28 = vld [vmem:[%s1 + $0x18] sm:$0xff]
    %v29 = vld [vmem:[%s1 + $0x20] sm:$0xff]
    %v30 = vld [vmem:[%s1 + $0x28] sm:$0xff]
    %v31 = vld [vmem:[%s1 + $0x30] sm:$0xff]
    %v32 = vld [vmem:[%s1 + $0x38] sm:$0xff]
    %v33 = vld [vmem:[%s1 + $0x40] sm:$0xff]
    %v34 = vld [vmem:[%s1 + $0x48] sm:$0xff]
    %v35 = vld [vmem:[%s1 + $0x50] sm:$0xff]
    %v36 = vld [vmem:[%s1 + $0x58] sm:$0xff]
    %v37 = vld [vmem:[%s1 + $0x60] sm:$0xff]
    %v38 = vld [vmem:[%s1 + $0x68] sm:$0xff]
    %v39 = vld [vmem:[%s1 + $0x70] sm:$0xff]
    %v40 = vld [vmem:[%s1 + $0x78] sm:$0xff]
    %v41 = vld [vmem:[%s1 + $0x80] sm:$0xff]
    %v42 = vld [vmem:[%s1 + $0x88] sm:$0xff]
    %v43 = vld [vmem:[%s1 + $0x90] sm:$0xff]
    %v44 = vld [vmem:[%s1 + $0x98] sm:$0xff]
    %v45 = vld [vmem:[%s1 + $0xa0] sm:$0xff]
    %v46 = vld [vmem:[%s1 + $0xa8] sm:$0xff]
    %v47 = vld [vmem:[%s1 + $0xb0] sm:$0xff]
    %v48 = vld [vmem:[%s1 + $0xb8] sm:$0xff]
    %v49 = vld [vmem:[%s1 + $0xc0] sm:$0x33]
    %v50 = vld [vmem:[%s1 + $0xc8] sm:$0x33]
    %v51 = vld [vmem:[%s2] sm:$0xf]
    %v53 = vlaneseq
    %v54 = vshrl.u32 %v53, 7
    %v55 = vsub.s32 0, %v54
    %v56 = vrot.slane %v51, %v55
    %v57 = vlaneseq
    %v58 = vshrl.u32 %v57, 7
    %v59 = vsub.s32 1, %v58
    %v60 = vrot.slane %v51, %v59
    %v61 = vlaneseq
    %v62 = vshrl.u32 %v61, 7
    %v63 = vsub.s32 2, %v62
    %v64 = vrot.slane %v51, %v63
    %v65 = vlaneseq
    %v66 = vshrl.u32 %v65, 7
    %v67 = vsub.s32 3, %v66
    %v68 = vrot.slane %v51, %v67
    %v99 = vunpack.c.l.b16 %v25
    %v100 = vunpack.c.h.b16 %v25
    %v101 = vunpack.c.l.b16 %v26
    %v102 = vunpack.c.h.b16 %v26
    %v103 = vunpack.c.l.b16 %v27
    %v104 = vunpack.c.h.b16 %v27
    %v105 = vunpack.c.l.b16 %v28
    %v106 = vunpack.c.h.b16 %v28
    %v107 = vunpack.c.l.b16 %v29
    %v108 = vunpack.c.h.b16 %v29
    %v109 = vunpack.c.l.b16 %v30
    %v110 = vunpack.c.h.b16 %v30
    %v111 = vunpack.c.l.b16 %v31
    %v112 = vunpack.c.h.b16 %v31
    %v113 = vunpack.c.l.b16 %v32
    %v114 = vunpack.c.h.b16 %v32
    %v115 = vunpack.c.l.b16 %v33
    %v116 = vunpack.c.h.b16 %v33
    %v117 = vunpack.c.l.b16 %v34
    %v118 = vunpack.c.h.b16 %v34
    %v119 = vunpack.c.l.b16 %v35
    %v120 = vunpack.c.h.b16 %v35
    %v121 = vunpack.c.l.b16 %v36
    %v122 = vunpack.c.h.b16 %v36
    %v123 = vunpack.c.l.b16 %v37
    %v124 = vunpack.c.h.b16 %v37
    %v125 = vunpack.c.l.b16 %v38
    %v126 = vunpack.c.h.b16 %v38
    %v127 = vunpack.c.l.b16 %v39
    %v128 = vunpack.c.h.b16 %v39
    %v129 = vunpack.c.l.b16 %v40
    %v130 = vunpack.c.h.b16 %v40
    %v131 = vunpack.c.l.b16 %v41
    %v132 = vunpack.c.h.b16 %v41
    %v133 = vunpack.c.l.b16 %v42
    %v134 = vunpack.c.h.b16 %v42
    %v135 = vunpack.c.l.b16 %v43
    %v136 = vunpack.c.h.b16 %v43
    %v137 = vunpack.c.l.b16 %v44
    %v138 = vunpack.c.h.b16 %v44
    %v139 = vunpack.c.l.b16 %v45
    %v140 = vunpack.c.h.b16 %v45
    %v141 = vunpack.c.l.b16 %v46
    %v142 = vunpack.c.h.b16 %v46
    %v143 = vunpack.c.l.b16 %v47
    %v144 = vunpack.c.h.b16 %v47
    %v145 = vunpack.c.l.b16 %v48
    %v146 = vunpack.c.h.b16 %v48
    %v147 = vunpack.c.l.b16 %v49
    %v148 = vunpack.c.h.b16 %v49
    %v149 = vunpack.c.l.b16 %v50
    %v150 = vunpack.c.h.b16 %v50
    %v151 = vpack.c.b16 %v103, %v99
    %v152 = vpack.c.b16 %v104, %v100
    %v153 = vpack.c.b16 %v105, %v101
    %v154 = vpack.c.b16 %v106, %v102
    %v155 = vpack.c.b16 %v111, %v107
    %v156 = vpack.c.b16 %v112, %v108
    %v157 = vpack.c.b16 %v113, %v109
    %v158 = vpack.c.b16 %v114, %v110
    %v159 = vpack.c.b16 %v119, %v115
    %v160 = vpack.c.b16 %v120, %v116
    %v161 = vpack.c.b16 %v121, %v117
    %v162 = vpack.c.b16 %v122, %v118
    %v163 = vpack.c.b16 %v127, %v123
    %v164 = vpack.c.b16 %v128, %v124
    %v165 = vpack.c.b16 %v129, %v125
    %v166 = vpack.c.b16 %v130, %v126
    %v167 = vpack.c.b16 %v135, %v131
    %v168 = vpack.c.b16 %v136, %v132
    %v169 = vpack.c.b16 %v137, %v133
    %v170 = vpack.c.b16 %v138, %v134
    %v171 = vpack.c.b16 %v143, %v139
    %v172 = vpack.c.b16 %v144, %v140
    %v173 = vpack.c.b16 %v145, %v141
    %v174 = vpack.c.b16 %v146, %v142
    %v175 = vpack.c.b16 %v147, %v147
    %v176 = vpack.c.b16 %v148, %v148
    %v177 = vpack.c.b16 %v149, %v149
    %v178 = vpack.c.b16 %v150, %v150
    %vm203 = vcmask 818176
    %v205 = vsel %vm203, %v24, 0
    %vm207 = vcmask 1041408
    %v209 = vsel %vm207, %v175, 0
    %v212 = vsel %vm207, %v176, 0
    %v215 = vsel %vm207, %v177, 0
    %v218 = vsel %vm207, %v178, 0
    %220 = vmatprep.subr.bf16.mxu0 0
    %221 = vmatpush1.bf16.msra.mxu0 0
    %222 = vmatprep.subr.bf16.mxu0 %v212
    %223 = vmatpush1.bf16.msra.mxu0 %v209
    %224 = vmatprep.subr.bf16.mxu0 %v172
    %225 = vmatpush1.bf16.msra.mxu0 %v171
    %226 = vmatprep.subr.bf16.mxu0 %v168
    %227 = vmatpush1.bf16.msra.mxu0 %v167
    %228 = vmatprep.subr.bf16.mxu0 %v164
    %229 = vmatpush1.bf16.msra.mxu0 %v163
    %230 = vmatprep.subr.bf16.mxu0 %v160
    %231 = vmatpush1.bf16.msra.mxu0 %v159
    %232 = vmatprep.subr.bf16.mxu0 %v156
    %233 = vmatpush1.bf16.msra.mxu0 %v155
    %234 = vmatprep.subr.bf16.mxu0 %v152
    %235 = vmatpush1.bf16.msra.mxu0 %v151
    %236 = vmatprep.subr.bf16.mxu0 0
    %237 = vmatpush2.bf16.msra.mxu0 0
    %238 = vmatprep.subr.bf16.mxu0 0
    %239 = vmatpush2.bf16.msra.mxu0 0
    %240 = vmatprep.subr.bf16.mxu0 0
    %241 = vmatpush2.bf16.msra.mxu0 0
    %242 = vmatprep.subr.bf16.mxu0 0
    %243 = vmatpush2.bf16.msra.mxu0 0
    %244 = vmatprep.subr.bf16.mxu0 0
    %245 = vmatpush2.bf16.msra.mxu0 0
    %246 = vmatprep.subr.bf16.mxu0 0
    %247 = vmatpush2.bf16.msra.mxu0 0
    %248 = vmatprep.subr.bf16.mxu0 0
    %249 = vmatpush2.bf16.msra.mxu0 0
    %250 = vmatprep.subr.bf16.mxu0 0
    %251 = vmatpush2.bf16.msra.mxu0 0
    %252 = vmatprep.mubr.bf16.mxu0 0
    %253 = vmatmul.mubr.bf16.gmra.mxu0 %v205
    %v254 = vpop.f32.mrf.mxu0
    %v255 = vadd.f32 %v56, %v254
    %v256 = vpop.f32.mrf.mxu0
    %v257 = vadd.f32 %v60, %v256
    %v258 = vpop.f32.mrf.mxu0
    %v259 = vadd.f32 %v56, %v258
    %v260 = vpop.f32.mrf.mxu0
    %v261 = vadd.f32 %v60, %v260
    %262 = vdwg.mxu0
    %263 = vmatprep.subr.bf16.mxu0 0
    %264 = vmatpush1.bf16.msra.mxu0 0
    %265 = vmatprep.subr.bf16.mxu0 %v218
    %266 = vmatpush1.bf16.msra.mxu0 %v215
    %267 = vmatprep.subr.bf16.mxu0 %v174
    %268 = vmatpush1.bf16.msra.mxu0 %v173
    %269 = vmatprep.subr.bf16.mxu0 %v170
    %270 = vmatpush1.bf16.msra.mxu0 %v169
    %271 = vmatprep.subr.bf16.mxu0 %v166
    %272 = vmatpush1.bf16.msra.mxu0 %v165
    %273 = vmatprep.subr.bf16.mxu0 %v162
    %274 = vmatpush1.bf16.msra.mxu0 %v161
    %275 = vmatprep.subr.bf16.mxu0 %v158
    %276 = vmatpush1.bf16.msra.mxu0 %v157
    %277 = vmatprep.subr.bf16.mxu0 %v154
    %278 = vmatpush1.bf16.msra.mxu0 %v153
    %279 = vmatprep.subr.bf16.mxu0 0
    %280 = vmatpush2.bf16.msra.mxu0 0
    %281 = vmatprep.subr.bf16.mxu0 0
    %282 = vmatpush2.bf16.msra.mxu0 0
    %283 = vmatprep.subr.bf16.mxu0 0
    %284 = vmatpush2.bf16.msra.mxu0 0
    %285 = vmatprep.subr.bf16.mxu0 0
    %286 = vmatpush2.bf16.msra.mxu0 0
    %287 = vmatprep.subr.bf16.mxu0 0
    %288 = vmatpush2.bf16.msra.mxu0 0
    %289 = vmatprep.subr.bf16.mxu0 0
    %290 = vmatpush2.bf16.msra.mxu0 0
    %291 = vmatprep.subr.bf16.mxu0 0
    %292 = vmatpush2.bf16.msra.mxu0 0
    %293 = vmatprep.subr.bf16.mxu0 0
    %294 = vmatpush2.bf16.msra.mxu0 0
    %295 = vmatprep.mubr.bf16.mxu0 0
    %296 = vmatmul.mubr.bf16.gmra.mxu0 %v205
    %v297 = vpop.f32.mrf.mxu0
    %v298 = vadd.f32 %v64, %v297
    %v299 = vpop.f32.mrf.mxu0
    %v300 = vadd.f32 %v68, %v299
    %v301 = vpop.f32.mrf.mxu0
    %v302 = vadd.f32 %v64, %v301
    %v303 = vpop.f32.mrf.mxu0
    %v304 = vadd.f32 %v68, %v303
    %305 = vdwg.mxu0
    %v306 = vmax.f32 %v255, 0.0
    %v307 = vmax.f32 %v257, 0.0
    %v308 = vmax.f32 %v298, 0.0
    %v309 = vmax.f32 %v300, 0.0
    %v310 = vmax.f32 %v259, 0.0
    %v311 = vmax.f32 %v261, 0.0
    %v312 = vmax.f32 %v302, 0.0
    %v313 = vmax.f32 %v304, 0.0
    %v314 = vpack.c.bf16 %v310, %v306
    %v315 = vpack.c.bf16 %v311, %v307
    %v316 = vpack.c.bf16 %v312, %v308
    %v317 = vpack.c.bf16 %v313, %v309
    %v318 = vld [vmem:[%s3] sm:$0xf]
    %v319 = vld [vmem:[%s3 + $0x4] sm:$0xf]
    %v320 = vld [vmem:[%s3 + $0x8] sm:$0xf]
    %v321 = vld [vmem:[%s3 + $0xc] sm:$0xf]
    %v322 = vld [vmem:[%s3 + $0x10] sm:$0xf]
    %v323 = vld [vmem:[%s3 + $0x14] sm:$0xf]
    %v324 = vld [vmem:[%s3 + $0x18] sm:$0xf]
    %v325 = vld [vmem:[%s3 + $0x1c] sm:$0xf]
    %v326 = vld [vmem:[%s3 + $0x20] sm:$0xf]
    %v327 = vld [vmem:[%s3 + $0x24] sm:$0xf]
    %v328 = vld [vmem:[%s3 + $0x28] sm:$0xf]
    %v329 = vld [vmem:[%s3 + $0x2c] sm:$0xf]
    %v330 = vld [vmem:[%s3 + $0x30] sm:$0xf]
    %v331 = vld [vmem:[%s3 + $0x34] sm:$0xf]
    %v332 = vld [vmem:[%s3 + $0x38] sm:$0xf]
    %v333 = vld [vmem:[%s3 + $0x3c] sm:$0xf]
    %v334 = vld [vmem:[%s3 + $0x40] sm:$0xf]
    %v335 = vld [vmem:[%s3 + $0x44] sm:$0xf]
    %v336 = vld [vmem:[%s3 + $0x48] sm:$0xf]
    %v337 = vld [vmem:[%s3 + $0x4c] sm:$0xf]
    %v338 = vld [vmem:[%s3 + $0x50] sm:$0xf]
    %v339 = vld [vmem:[%s3 + $0x54] sm:$0xf]
    %v340 = vld [vmem:[%s3 + $0x58] sm:$0xf]
    %v341 = vld [vmem:[%s3 + $0x5c] sm:$0xf]
    %v342 = vld [vmem:[%s3 + $0x60] sm:$0xf]
    %v343 = vld [vmem:[%s3 + $0x64] sm:$0xf]
    %v344 = vld [vmem:[%s3 + $0x68] sm:$0xf]
    %v345 = vld [vmem:[%s3 + $0x6c] sm:$0xf]
    %v346 = vld [vmem:[%s3 + $0x70] sm:$0xf]
    %v347 = vld [vmem:[%s3 + $0x74] sm:$0xf]
    %v348 = vld [vmem:[%s3 + $0x78] sm:$0xf]
    %v349 = vld [vmem:[%s3 + $0x7c] sm:$0xf]
    %v350 = vld [vmem:[%s3 + $0x80] sm:$0xf]
    %v351 = vld [vmem:[%s3 + $0x84] sm:$0xf]
    %v352 = vld [vmem:[%s3 + $0x88] sm:$0xf]
    %v353 = vld [vmem:[%s3 + $0x8c] sm:$0xf]
    %v354 = vld [vmem:[%s3 + $0x90] sm:$0xf]
    %v355 = vld [vmem:[%s3 + $0x94] sm:$0xf]
    %v356 = vld [vmem:[%s3 + $0x98] sm:$0xf]
    %v357 = vld [vmem:[%s3 + $0x9c] sm:$0xf]
    %v358 = vld [vmem:[%s3 + $0xa0] sm:$0xf]
    %v359 = vld [vmem:[%s3 + $0xa4] sm:$0xf]
    %v360 = vld [vmem:[%s3 + $0xa8] sm:$0xf]
    %v361 = vld [vmem:[%s3 + $0xac] sm:$0xf]
    %v362 = vld [vmem:[%s3 + $0xb0] sm:$0xf]
    %v363 = vld [vmem:[%s3 + $0xb4] sm:$0xf]
    %v364 = vld [vmem:[%s3 + $0xb8] sm:$0xf]
    %v365 = vld [vmem:[%s3 + $0xbc] sm:$0xf]
    %v366 = vld [vmem:[%s3 + $0xc0] sm:$0xf]
    %v367 = vld [vmem:[%s3 + $0xc4] sm:$0xf]
    %v368 = vld [vmem:[%s3 + $0xc8] sm:$0xf]
    %v369 = vld [vmem:[%s3 + $0xcc] sm:$0xf]
    %v370 = vld [vmem:[%s3 + $0xd0] sm:$0xf]
    %v371 = vld [vmem:[%s3 + $0xd4] sm:$0xf]
    %v372 = vld [vmem:[%s3 + $0xd8] sm:$0xf]
    %v373 = vld [vmem:[%s3 + $0xdc] sm:$0xf]
    %v374 = vld [vmem:[%s3 + $0xe0] sm:$0xf]
    %v375 = vld [vmem:[%s3 + $0xe4] sm:$0xf]
    %v376 = vld [vmem:[%s3 + $0xe8] sm:$0xf]
    %v377 = vld [vmem:[%s3 + $0xec] sm:$0xf]
    %v378 = vld [vmem:[%s3 + $0xf0] sm:$0xf]
    %v379 = vld [vmem:[%s3 + $0xf4] sm:$0xf]
    %v380 = vld [vmem:[%s3 + $0xf8] sm:$0xf]
    %v381 = vld [vmem:[%s3 + $0xfc] sm:$0xf]
    %v446 = vunpack.c.l.b16 %v318
    %v447 = vunpack.c.l.b16 %v319
    %v448 = vunpack.c.l.b16 %v320
    %v449 = vunpack.c.l.b16 %v321
    %v450 = vunpack.c.l.b16 %v322
    %v451 = vunpack.c.l.b16 %v323
    %v452 = vunpack.c.l.b16 %v324
    %v453 = vunpack.c.l.b16 %v325
    %v454 = vunpack.c.l.b16 %v326
    %v455 = vunpack.c.l.b16 %v327
    %v456 = vunpack.c.l.b16 %v328
    %v457 = vunpack.c.l.b16 %v329
    %v458 = vunpack.c.l.b16 %v330
    %v459 = vunpack.c.l.b16 %v331
    %v460 = vunpack.c.l.b16 %v332
    %v461 = vunpack.c.l.b16 %v333
    %v462 = vunpack.c.l.b16 %v334
    %v463 = vunpack.c.l.b16 %v335
    %v464 = vunpack.c.l.b16 %v336
    %v465 = vunpack.c.l.b16 %v337
    %v466 = vunpack.c.l.b16 %v338
    %v467 = vunpack.c.l.b16 %v339
    %v468 = vunpack.c.l.b16 %v340
    %v469 = vunpack.c.l.b16 %v341
    %v470 = vunpack.c.l.b16 %v342
    %v471 = vunpack.c.l.b16 %v343
    %v472 = vunpack.c.l.b16 %v344
    %v473 = vunpack.c.l.b16 %v345
    %v474 = vunpack.c.l.b16 %v346
    %v475 = vunpack.c.l.b16 %v347
    %v476 = vunpack.c.l.b16 %v348
    %v477 = vunpack.c.l.b16 %v349
    %v478 = vunpack.c.l.b16 %v350
    %v479 = vunpack.c.l.b16 %v351
    %v480 = vunpack.c.l.b16 %v352
    %v481 = vunpack.c.l.b16 %v353
    %v482 = vunpack.c.l.b16 %v354
    %v483 = vunpack.c.l.b16 %v355
    %v484 = vunpack.c.l.b16 %v356
    %v485 = vunpack.c.l.b16 %v357
    %v486 = vunpack.c.l.b16 %v358
    %v487 = vunpack.c.l.b16 %v359
    %v488 = vunpack.c.l.b16 %v360
    %v489 = vunpack.c.l.b16 %v361
    %v490 = vunpack.c.l.b16 %v362
    %v491 = vunpack.c.l.b16 %v363
    %v492 = vunpack.c.l.b16 %v364
    %v493 = vunpack.c.l.b16 %v365
    %v494 = vunpack.c.l.b16 %v366
    %v495 = vunpack.c.l.b16 %v367
    %v496 = vunpack.c.l.b16 %v368
    %v497 = vunpack.c.l.b16 %v369
    %v498 = vunpack.c.l.b16 %v370
    %v499 = vunpack.c.l.b16 %v371
    %v500 = vunpack.c.l.b16 %v372
    %v501 = vunpack.c.l.b16 %v373
    %v502 = vunpack.c.l.b16 %v374
    %v503 = vunpack.c.l.b16 %v375
    %v504 = vunpack.c.l.b16 %v376
    %v505 = vunpack.c.l.b16 %v377
    %v506 = vunpack.c.l.b16 %v378
    %v507 = vunpack.c.l.b16 %v379
    %v508 = vunpack.c.l.b16 %v380
    %v509 = vunpack.c.l.b16 %v381
    %v510 = vpack.c.b16 %v447, %v446
    %v511 = vpack.c.b16 %v449, %v448
    %v512 = vpack.c.b16 %v451, %v450
    %v513 = vpack.c.b16 %v453, %v452
    %v514 = vpack.c.b16 %v455, %v454
    %v515 = vpack.c.b16 %v457, %v456
    %v516 = vpack.c.b16 %v459, %v458
    %v517 = vpack.c.b16 %v461, %v460
    %v518 = vpack.c.b16 %v463, %v462
    %v519 = vpack.c.b16 %v465, %v464
    %v520 = vpack.c.b16 %v467, %v466
    %v521 = vpack.c.b16 %v469, %v468
    %v522 = vpack.c.b16 %v471, %v470
    %v523 = vpack.c.b16 %v473, %v472
    %v524 = vpack.c.b16 %v475, %v474
    %v525 = vpack.c.b16 %v477, %v476
    %v526 = vpack.c.b16 %v479, %v478
    %v527 = vpack.c.b16 %v481, %v480
    %v528 = vpack.c.b16 %v483, %v482
    %v529 = vpack.c.b16 %v485, %v484
    %v530 = vpack.c.b16 %v487, %v486
    %v531 = vpack.c.b16 %v489, %v488
    %v532 = vpack.c.b16 %v491, %v490
    %v533 = vpack.c.b16 %v493, %v492
    %v534 = vpack.c.b16 %v495, %v494
    %v535 = vpack.c.b16 %v497, %v496
    %v536 = vpack.c.b16 %v499, %v498
    %v537 = vpack.c.b16 %v501, %v500
    %v538 = vpack.c.b16 %v503, %v502
    %v539 = vpack.c.b16 %v505, %v504
    %v540 = vpack.c.b16 %v507, %v506
    %v541 = vpack.c.b16 %v509, %v508
    %574 = vmatprep.subr.bf16.mxu0 0
    %575 = vmatpush1.bf16.msra.mxu0 %v517
    %576 = vmatprep.subr.bf16.mxu0 0
    %577 = vmatpush1.bf16.msra.mxu0 %v516
    %578 = vmatprep.subr.bf16.mxu0 0
    %579 = vmatpush1.bf16.msra.mxu0 %v515
    %580 = vmatprep.subr.bf16.mxu0 0
    %581 = vmatpush1.bf16.msra.mxu0 %v514
    %582 = vmatprep.subr.bf16.mxu0 0
    %583 = vmatpush1.bf16.msra.mxu0 %v513
    %584 = vmatprep.subr.bf16.mxu0 0
    %585 = vmatpush1.bf16.msra.mxu0 %v512
    %586 = vmatprep.subr.bf16.mxu0 0
    %587 = vmatpush1.bf16.msra.mxu0 %v511
    %588 = vmatprep.subr.bf16.mxu0 0
    %589 = vmatpush1.bf16.msra.mxu0 %v510
    %590 = vmatprep.subr.bf16.mxu0 0
    %591 = vmatpush2.bf16.msra.mxu0 %v525
    %592 = vmatprep.subr.bf16.mxu0 0
    %593 = vmatpush2.bf16.msra.mxu0 %v524
    %594 = vmatprep.subr.bf16.mxu0 0
    %595 = vmatpush2.bf16.msra.mxu0 %v523
    %596 = vmatprep.subr.bf16.mxu0 0
    %597 = vmatpush2.bf16.msra.mxu0 %v522
    %598 = vmatprep.subr.bf16.mxu0 0
    %599 = vmatpush2.bf16.msra.mxu0 %v521
    %600 = vmatprep.subr.bf16.mxu0 0
    %601 = vmatpush2.bf16.msra.mxu0 %v520
    %602 = vmatprep.subr.bf16.mxu0 0
    %603 = vmatpush2.bf16.msra.mxu0 %v519
    %604 = vmatprep.subr.bf16.mxu0 0
    %605 = vmatpush2.bf16.msra.mxu0 %v518
    %606 = vmatprep.mubr.bf16.mxu0 %v315
    %607 = vmatmul.mubr.bf16.gmra.mxu0 %v314
    %v608 = vpop.f32.mrf.mxu0
    %v609 = vadd.f32 0.0, %v608
    %v610 = vpop.f32.mrf.mxu0
    %v611 = vpop.f32.mrf.mxu0
    %v612 = vadd.f32 0.0, %v611
    %v613 = vpop.f32.mrf.mxu0
    %614 = vdwg.mxu0
    %615 = vmatprep.subr.bf16.mxu0 0
    %616 = vmatpush1.bf16.msra.mxu0 %v533
    %617 = vmatprep.subr.bf16.mxu0 0
    %618 = vmatpush1.bf16.msra.mxu0 %v532
    %619 = vmatprep.subr.bf16.mxu0 0
    %620 = vmatpush1.bf16.msra.mxu0 %v531
    %621 = vmatprep.subr.bf16.mxu0 0
    %622 = vmatpush1.bf16.msra.mxu0 %v530
    %623 = vmatprep.subr.bf16.mxu0 0
    %624 = vmatpush1.bf16.msra.mxu0 %v529
    %625 = vmatprep.subr.bf16.mxu0 0
    %626 = vmatpush1.bf16.msra.mxu0 %v528
    %627 = vmatprep.subr.bf16.mxu0 0
    %628 = vmatpush1.bf16.msra.mxu0 %v527
    %629 = vmatprep.subr.bf16.mxu0 0
    %630 = vmatpush1.bf16.msra.mxu0 %v526
    %631 = vmatprep.subr.bf16.mxu0 0
    %632 = vmatpush2.bf16.msra.mxu0 %v541
    %633 = vmatprep.subr.bf16.mxu0 0
    %634 = vmatpush2.bf16.msra.mxu0 %v540
    %635 = vmatprep.subr.bf16.mxu0 0
    %636 = vmatpush2.bf16.msra.mxu0 %v539
    %637 = vmatprep.subr.bf16.mxu0 0
    %638 = vmatpush2.bf16.msra.mxu0 %v538
    %639 = vmatprep.subr.bf16.mxu0 0
    %640 = vmatpush2.bf16.msra.mxu0 %v537
    %641 = vmatprep.subr.bf16.mxu0 0
    %642 = vmatpush2.bf16.msra.mxu0 %v536
    %643 = vmatprep.subr.bf16.mxu0 0
    %644 = vmatpush2.bf16.msra.mxu0 %v535
    %645 = vmatprep.subr.bf16.mxu0 0
    %646 = vmatpush2.bf16.msra.mxu0 %v534
    %647 = vmatprep.mubr.bf16.mxu0 %v317
    %648 = vmatmul.mubr.bf16.gmra.mxu0 %v316
    %v649 = vpop.f32.mrf.mxu0
    %v650 = vadd.f32 %v609, %v649
    %v651 = vpop.f32.mrf.mxu0
    %v652 = vpop.f32.mrf.mxu0
    %v653 = vadd.f32 %v612, %v652
    %v654 = vpop.f32.mrf.mxu0
    %655 = vdwg.mxu0
    %p656 = scmp.eq.s32.totalorder 0, 0
    // Predicated region
    $region22: #{ffn_forward.1} parent=1 // pred_check
      %p657 = pneg %p656
    $region23: #{ffn_forward.1} parent=1 // pred_check_branch
      %659 = sbr.rel (%p657) target = $region25
    $region24: #{ffn_forward.1} parent=1 // pred_region
      %v660 = vld [vmem:[%s4] sm:$0x1]
      %v662 = vlaneseq
      %v663 = vshrl.u32 %v662, 7
      %v664 = vsub.s32 0, %v663
      %v665 = vrot.slane %v660, %v664
      %v667 = vadd.f32 %v650, %v665
      %v668 = vadd.f32 %v653, %v665
      %669 = vst.msk [vmem:[#allocation2] sm:$0xff] %vm203, %v667
      %670 = vst.msk [vmem:[#allocation2 + $0x8] sm:$0xff] %vm203, %v668
    $region25: #{ffn_forward.1} parent=1 // pred_fallthru
      _
    %p671 = scmp.gt.s32.totalorder 0, 0
    // Predicated region
    $region26: #{ffn_forward.1} parent=1 // pred_check
      %p672 = pneg %p671
    $region27: #{ffn_forward.1} parent=1 // pred_check_branch
      %674 = sbr.rel (%p672) target = $region29
    $region28: #{ffn_forward.1} parent=1 // pred_region
      %v675 = vld [vmem:[#allocation2] sm:$0xff]
      %v676 = vld [vmem:[#allocation2 + $0x8] sm:$0xff]
      %v677 = vadd.f32 %v675, %v650
      %v678 = vadd.f32 %v676, %v653
      %679 = vst.msk [vmem:[#allocation2] sm:$0xff] %vm203, %v677
      %680 = vst.msk [vmem:[#allocation2 + $0x8] sm:$0xff] %vm203, %v678
    $region29: #{ffn_forward.1} parent=1 // pred_fallthru
      _
    // Predicated region
    $region30: #{ffn_forward.1} parent=1 // pred_check
      _
    $region31: #{ffn_forward.1} parent=1 // pred_check_branch
      %682 = sbr.rel (0) target = $region33
    $region32: #{ffn_forward.1} parent=1 // pred_region
      %s684 = ssub.s32 256, 256
      %685 = vsyncadd [#allocation3], %s684
      %s686 = sshll.u32 [#allocation2], 4
      %s687 = int_to_ptr.vmem [resolvable:$true] %s686
      %692 = dma.vmem_to_hbm [thread:$0]  %s687, 256, %s5, [#allocation3], 128, 128, 8
    $region33: #{ffn_forward.1} parent=1 // pred_fallthru
      _
    // Predicated region
    $region34: #{ffn_forward.1} parent=1 // pred_check
      _
    $region35: #{ffn_forward.1} parent=1 // pred_check_branch
      %694 = sbr.rel (0) target = $region37
    $region36: #{ffn_forward.1} parent=1 // pred_region
      %695 = dma.done [#allocation3], 256
    $region37: #{ffn_forward.1} parent=1 // pred_fallthru
      _
    %696 = vsyncpa [#allocation3], 1

</llo_original>
